<compile_context>
chip_gen: v7x
topology: tpu7x:2x2x1
jax: 0.10.0
libtpu: 0.0.40
codegen_flags: <defaults>
</compile_context>

<pallas_src>
import jax
import jax.numpy as jnp
from jax.experimental import pallas as pl
from jax.experimental.pallas import tpu as pltpu


def _upsample_conv3x3_kernel(x_ref, m_ref, r_ref, b_ref, o_ref):
    """Fused nearest-2x upsample + 3x3 'same' conv for N_blk batch elements.

    x_ref: (N_blk, H, W*C)         bf16 original image(s), W,C folded into lanes
    m_ref: (W*C, 3*Wo*C)           bf16 banded matrices, one per kh tap, stacked
                                   along lanes (W-upsample + kw taps + Cin->Cout,
                                   zero W boundary already folded in)
    r_ref: (3, N_blk*Ho, N_blk*H)  bf16 0/1 block-diagonal row matrices
                                   (H-upsample + kh halo, zero H boundary rows)
    b_ref: (1, Wo*C)               f32 bias tiled over the folded lanes
    o_ref: (N_blk, Ho, Wo*C)       output (lane-dense: last dim multiple of 128)
    """
    nb, h, wc = x_ref.shape
    nb_ho = r_ref.shape[1]
    woc = o_ref.shape[2]

    # Fold the batch into the MXU M dimension.
    x2d = x_ref[...].reshape(nb * h, wc)                          # (Nb*H, WC)

    # One fat contraction for all three kw taps (Cin->Cout + W-upsample).
    a = jnp.dot(x2d, m_ref[...],
                preferred_element_type=jnp.float32)               # (Nb*H, 3*WoC)
    a = a.astype(jnp.bfloat16)

    # Row replication (H-upsample + kh halo + zero pad rows) on the MXU.
    acc = jnp.zeros((nb_ho, woc), dtype=jnp.float32)              # (Nb*Ho, WoC)
    for kh in range(3):
        acc = acc + jnp.dot(r_ref[kh], a[:, kh * woc:(kh + 1) * woc],
                            preferred_element_type=jnp.float32)

    acc = acc + b_ref[...]                                        # broadcast (1, WoC)
    o_ref[...] = acc.reshape(nb, nb_ho // nb, woc).astype(o_ref.dtype)


def choose_n_blk(N, H, *, target_rows=256, min_grid_steps=2):
    """Images per grid step: fill ~target_rows MXU rows (256 v6e/v7x, 128 v5e)
    but keep >= min_grid_steps grid steps so both v7x TensorCores get work."""
    n_blk = max(1, min(N, target_rows // max(1, H)))
    if N >= min_grid_steps:
        n_blk = min(n_blk, max(1, N // min_grid_steps))
    while N % n_blk:            # make it a divisor of N
        n_blk -= 1
    return n_blk


def build_upsample_constants(weight_oihw, bias, *, H, W, n_blk,
                             param_dtype=jnp.bfloat16):
    """Weight-dependent constants.  Build once per weight set (hoist/cache);
    do NOT rebuild in the per-step forward path."""
    Cout, Cin, KH, KW = weight_oihw.shape
    assert (KH, KW) == (3, 3) and Cout == Cin
    C = Cin
    Ho, Wo = 2 * H, 2 * W
    WC, WoC = W * C, Wo * C

    w_hwio = jnp.transpose(weight_oihw, (2, 3, 1, 0)).astype(jnp.float32)  # (3,3,Cin,Cout)

    # --- M_kh: fold W-upsample + kw taps + Cin->Cout (zero W boundary) ---
    # out[h2, w2, co] += sum_{kw,ci} x[(w2+kw-1)//2 if valid][ci] * W[kh,kw,ci,co]
    w2 = jnp.arange(Wo)
    kw = jnp.arange(3)
    j = w2[None, :] + kw[:, None] - 1                              # (3, Wo) upsampled W idx
    valid = (j >= 0) & (j < Wo)
    src = jnp.where(valid, j // 2, -1)                             # original W idx or -1
    wi = jnp.arange(W)
    T = (src[:, None, :] == wi[None, :, None]).astype(jnp.float32)  # (3, W, Wo)
    M = jnp.einsum('qwv,kqio->kwivo', T, w_hwio).reshape(3, WC, WoC)
    # Stack the three kh taps along output lanes -> single MXU contraction.
    M_stack = jnp.transpose(M, (1, 0, 2)).reshape(WC, 3 * WoC)     # (WC, 3*WoC)

    # --- R_kh: fold H-upsample + kh halo (zero H boundary rows) ---
    i_pad = jnp.arange(Ho + 2)
    r_idx = jnp.arange(H)
    R_pad = ((i_pad[:, None] >= 1) & (i_pad[:, None] <= Ho)
             & (r_idx[None, :] == (i_pad[:, None] - 1) // 2)).astype(jnp.float32)
    R = jnp.stack([R_pad[kh:kh + Ho] for kh in range(3)], axis=0)  # (3, Ho, H)
    # Block-diagonal over the N_blk images folded into one grid step.
    eye = jnp.eye(n_blk, dtype=jnp.float32)
    R_blk = jnp.einsum('mn,krh->kmrnh', eye, R).reshape(3, n_blk * Ho, n_blk * H)

    b_flat = jnp.tile(bias.astype(jnp.float32), Wo).reshape(1, WoC)  # (1, Wo*C), f32

    return M_stack.astype(param_dtype), R_blk.astype(param_dtype), b_flat


def upsample_forward_folded(x_flat, M_stack, R_blk, b_flat, *, n_blk,
                            out_dtype=jnp.float32):
    """Hot-path forward on the folded layout.  x_flat: (N, H, W*C)."""
    N, H, WC = x_flat.shape
    Ho = 2 * H
    WoC = b_flat.shape[1]
    assert N % n_blk == 0

    return pl.pallas_call(
        _upsample_conv3x3_kernel,
        out_shape=jax.ShapeDtypeStruct((N, Ho, WoC), out_dtype),
        grid_spec=pltpu.PrefetchScalarGridSpec(
            num_scalar_prefetch=0,
            grid=(N // n_blk,),
            in_specs=[
                pl.BlockSpec((n_blk, H, WC), lambda n: (n, 0, 0)),
                pl.BlockSpec((WC, 3 * WoC), lambda n: (0, 0)),
                pl.BlockSpec((3, n_blk * Ho, n_blk * H), lambda n: (0, 0, 0)),
                pl.BlockSpec((1, WoC), lambda n: (0, 0)),
            ],
            out_specs=pl.BlockSpec((n_blk, Ho, WoC), lambda n: (n, 0, 0)),
        ),
        compiler_params=pltpu.CompilerParams(
            dimension_semantics=("parallel",)),
    )(x_flat.astype(M_stack.dtype), M_stack, R_blk, b_flat)


# ---- NCHW glue (only needed at the PyTorch-layout boundary; a real pipeline
# should keep the folded (N, H, W*C) layout between layers) ----
def nchw_to_folded(x_nchw, dtype=None):
    N, C, H, W = x_nchw.shape
    x = jnp.transpose(x_nchw, (0, 2, 3, 1)).reshape(N, H, W * C)
    return x if dtype is None else x.astype(dtype)


def folded_to_nchw(y_flat, C):
    N, Ho, WoC = y_flat.shape
    Wo = WoC // C
    return jnp.transpose(y_flat.reshape(N, Ho, Wo, C), (0, 3, 1, 2))


def upsample_forward(x_nchw, weight_oihw, bias, *, n_blk=None):
    """Convenience drop-in NCHW forward (rebuilds constants every call —
    prefer build_upsample_constants once + upsample_forward_folded)."""
    N, C, H, W = x_nchw.shape
    if n_blk is None:
        n_blk = choose_n_blk(N, H)
    M_stack, R_blk, b_flat = build_upsample_constants(
        weight_oihw, bias, H=H, W=W, n_blk=n_blk)
    y = upsample_forward_folded(nchw_to_folded(x_nchw, M_stack.dtype),
                                M_stack, R_blk, b_flat,
                                n_blk=n_blk, out_dtype=x_nchw.dtype)
    return folded_to_nchw(y, C)


def _reference(x_nchw, weight_oihw, bias):
    """Pure-JAX reference (lax conv) for correctness checking."""
    x = jnp.transpose(x_nchw, (0, 2, 3, 1))
    x = jnp.repeat(jnp.repeat(x, 2, axis=1), 2, axis=2)
    w_hwio = jnp.transpose(weight_oihw, (2, 3, 1, 0))
    y = jax.lax.conv_general_dilated(
        x, w_hwio, window_strides=(1, 1), padding="SAME",
        dimension_numbers=("NHWC", "HWIO", "NHWC"),
        precision=jax.lax.Precision.HIGHEST) + bias[None, None, None, :]
    return jnp.transpose(y, (0, 3, 1, 2))


if __name__ == "__main__":
    N, C, H, W = 2, 4, 16, 16
    key = jax.random.PRNGKey(0)
    kx, kw_, kb = jax.random.split(key, 3)

    x = jax.random.normal(kx, (N, C, H, W), dtype=jnp.float32)

    # Deterministic Conv2d-style init (PyTorch default: U(-1/sqrt(fan_in), ...))
    fan_in = C * 3 * 3
    bound = 1.0 / jnp.sqrt(jnp.float32(fan_in))
    weight = jax.random.uniform(kw_, (C, C, 3, 3), jnp.float32, -bound, bound)
    bias = jax.random.uniform(kb, (C,), jnp.float32, -bound, bound)

    # At N=2 this picks n_blk=1 -> grid=(2,) so both v7x TCs get a block; at
    # larger N it batches up to ~256 MXU rows per step.
    n_blk = choose_n_blk(N, H)

    # Hoisted precompute: built ONCE per weight set, outside the hot path.
    M_stack, R_blk, b_flat = build_upsample_constants(
        weight, bias, H=H, W=W, n_blk=n_blk)

    x_folded = nchw_to_folded(x, M_stack.dtype)   # layout glue (skip in a folded pipeline)
    y_folded = upsample_forward_folded(x_folded, M_stack, R_blk, b_flat,
                                       n_blk=n_blk, out_dtype=x.dtype)
    y_folded = jax.block_until_ready(y_folded)
    out = folded_to_nchw(y_folded, C)

    ref = _reference(x, weight, bias)
    assert out.shape == (N, C, 2 * H, 2 * W), out.shape
    max_err = float(jnp.max(jnp.abs(out - ref)))
    # bf16 operands through the MXU (f32 accumulate): loosened tolerance.
    assert jnp.allclose(out, ref, atol=2.5e-2, rtol=2.5e-2), max_err

    print("KERNEL_OK")
</pallas_src>

<mosaic_0001>
module attributes {stable_mosaic.version = 11 : i64} {
  func.func @_upsample_conv3x3_kernel(%arg0: i32, %arg1: memref<1x16x64xbf16, #tpu.memory_space<vmem>>, %arg2: memref<64x384xbf16, #tpu.memory_space<vmem>>, %arg3: memref<3x32x16xbf16, #tpu.memory_space<vmem>>, %arg4: memref<1x128xf32, #tpu.memory_space<vmem>>, %arg5: memref<1x32x128xf32, #tpu.memory_space<vmem>>) attributes {dimension_semantics = [#tpu.dimension_semantics<parallel>], iteration_bounds = array<i64: 2>, scalar_prefetch = 0 : i64, scratch_operands = 0 : i64, tpu.core_type = #tpu.core_type<tc>, window_params = [{transform_indices = @transform_0, window_bounds = array<i64: 1, 16, 64>}, {pipeline_mode = #tpu.pipeline_mode<synchronous>, transform_indices = @transform_1, window_bounds = array<i64: 64, 384>}, {pipeline_mode = #tpu.pipeline_mode<synchronous>, transform_indices = @transform_2, window_bounds = array<i64: 3, 32, 16>}, {pipeline_mode = #tpu.pipeline_mode<synchronous>, transform_indices = @transform_3, window_bounds = array<i64: 1, 128>}, {transform_indices = @transform_4, window_bounds = array<i64: 1, 32, 128>}]} {
    %c0 = arith.constant 0 : index
    %c0_0 = arith.constant 0 : index
    %c0_1 = arith.constant 0 : index
    %0 = vector.load %arg1[%c0, %c0_0, %c0_1] : memref<1x16x64xbf16, #tpu.memory_space<vmem>>, vector<1x16x64xbf16>
    %1 = vector.shape_cast %0 : vector<1x16x64xbf16> to vector<16x64xbf16>
    %c0_2 = arith.constant 0 : index
    %c0_3 = arith.constant 0 : index
    %2 = vector.load %arg2[%c0_2, %c0_3] : memref<64x384xbf16, #tpu.memory_space<vmem>>, vector<64x384xbf16>
    %cst = arith.constant dense<0.000000e+00> : vector<16x384xf32>
    %3 = tpu.matmul %1, %2, %cst {dimension_numbers = #tpu.dot_dimension_numbers<[1], [0], [0], [1], [0, 0, 1, 1], [], []>} : vector<16x64xbf16>, vector<64x384xbf16>, vector<16x384xf32> -> vector<16x384xf32>
    %4 = arith.truncf %3 : vector<16x384xf32> to vector<16x384xbf16>
    %cst_4 = arith.constant 0.000000e+00 : f32
    %5 = vector.broadcast %cst_4 : f32 to vector<32x128xf32>
    %c0_5 = arith.constant 0 : index
    %c0_6 = arith.constant 0 : index
    %c0_7 = arith.constant 0 : index
    %6 = vector.load %arg3[%c0_5, %c0_6, %c0_7] : memref<3x32x16xbf16, #tpu.memory_space<vmem>>, vector<1x32x16xbf16>
    %7 = vector.shape_cast %6 : vector<1x32x16xbf16> to vector<32x16xbf16>
    %8 = vector.extract_strided_slice %4 {offsets = [0, 0], sizes = [16, 128], strides = [1, 1]} : vector<16x384xbf16> to vector<16x128xbf16>
    %cst_8 = arith.constant dense<0.000000e+00> : vector<32x128xf32>
    %9 = tpu.matmul %7, %8, %cst_8 {dimension_numbers = #tpu.dot_dimension_numbers<[1], [0], [0], [1], [0, 0, 1, 1], [], []>} : vector<32x16xbf16>, vector<16x128xbf16>, vector<32x128xf32> -> vector<32x128xf32>
    %10 = arith.addf %5, %9 : vector<32x128xf32>
    %c1 = arith.constant 1 : index
    %c0_9 = arith.constant 0 : index
    %c0_10 = arith.constant 0 : index
    %11 = vector.load %arg3[%c1, %c0_9, %c0_10] : memref<3x32x16xbf16, #tpu.memory_space<vmem>>, vector<1x32x16xbf16>
    %12 = vector.shape_cast %11 : vector<1x32x16xbf16> to vector<32x16xbf16>
    %13 = vector.extract_strided_slice %4 {offsets = [0, 128], sizes = [16, 128], strides = [1, 1]} : vector<16x384xbf16> to vector<16x128xbf16>
    %cst_11 = arith.constant dense<0.000000e+00> : vector<32x128xf32>
    %14 = tpu.matmul %12, %13, %cst_11 {dimension_numbers = #tpu.dot_dimension_numbers<[1], [0], [0], [1], [0, 0, 1, 1], [], []>} : vector<32x16xbf16>, vector<16x128xbf16>, vector<32x128xf32> -> vector<32x128xf32>
    %15 = arith.addf %10, %14 : vector<32x128xf32>
    %c2 = arith.constant 2 : index
    %c0_12 = arith.constant 0 : index
    %c0_13 = arith.constant 0 : index
    %16 = vector.load %arg3[%c2, %c0_12, %c0_13] : memref<3x32x16xbf16, #tpu.memory_space<vmem>>, vector<1x32x16xbf16>
    %17 = vector.shape_cast %16 : vector<1x32x16xbf16> to vector<32x16xbf16>
    %18 = vector.extract_strided_slice %4 {offsets = [0, 256], sizes = [16, 128], strides = [1, 1]} : vector<16x384xbf16> to vector<16x128xbf16>
    %cst_14 = arith.constant dense<0.000000e+00> : vector<32x128xf32>
    %19 = tpu.matmul %17, %18, %cst_14 {dimension_numbers = #tpu.dot_dimension_numbers<[1], [0], [0], [1], [0, 0, 1, 1], [], []>} : vector<32x16xbf16>, vector<16x128xbf16>, vector<32x128xf32> -> vector<32x128xf32>
    %20 = arith.addf %15, %19 : vector<32x128xf32>
    %c0_15 = arith.constant 0 : index
    %c0_16 = arith.constant 0 : index
    %21 = vector.load %arg4[%c0_15, %c0_16] : memref<1x128xf32, #tpu.memory_space<vmem>>, vector<1x128xf32>
    %22 = vector.broadcast %21 : vector<1x128xf32> to vector<32x128xf32>
    %23 = arith.addf %20, %22 : vector<32x128xf32>
    %24 = vector.shape_cast %23 : vector<32x128xf32> to vector<1x32x128xf32>
    %c0_17 = arith.constant 0 : index
    %c0_18 = arith.constant 0 : index
    %c0_19 = arith.constant 0 : index
    %25 = vector.load %arg5[%c0_17, %c0_18, %c0_19] : memref<1x32x128xf32, #tpu.memory_space<vmem>>, vector<1x32x128xf32>
    tpu.vector_store %arg5[%c0_17, %c0_18, %c0_19], %24 {strides = array<i32>} : memref<1x32x128xf32, #tpu.memory_space<vmem>>, vector<1x32x128xf32>,
    return
  }
  func.func @transform_0(%arg0: i32) -> (i32, i32, i32) {
    %c0_i32 = arith.constant 0 : i32
    %c0_i32_0 = arith.constant 0 : i32
    %c0_i32_1 = arith.constant 0 : i32
    return %arg0, %c0_i32, %c0_i32_0 : i32, i32, i32
  }
  func.func @transform_1(%arg0: i32) -> (i32, i32) {
    %c0_i32 = arith.constant 0 : i32
    %c0_i32_0 = arith.constant 0 : i32
    %c0_i32_1 = arith.constant 0 : i32
    return %c0_i32, %c0_i32_0 : i32, i32
  }
  func.func @transform_2(%arg0: i32) -> (i32, i32, i32) {
    %c0_i32 = arith.constant 0 : i32
    %c0_i32_0 = arith.constant 0 : i32
    %c0_i32_1 = arith.constant 0 : i32
    %c0_i32_2 = arith.constant 0 : i32
    return %c0_i32, %c0_i32_0, %c0_i32_1 : i32, i32, i32
  }
  func.func @transform_3(%arg0: i32) -> (i32, i32) {
    %c0_i32 = arith.constant 0 : i32
    %c0_i32_0 = arith.constant 0 : i32
    %c0_i32_1 = arith.constant 0 : i32
    return %c0_i32, %c0_i32_0 : i32, i32
  }
  func.func @transform_4(%arg0: i32) -> (i32, i32, i32) {
    %c0_i32 = arith.constant 0 : i32
    %c0_i32_0 = arith.constant 0 : i32
    %c0_i32_1 = arith.constant 0 : i32
    return %arg0, %c0_i32, %c0_i32_0 : i32, i32, i32
  }
}

</mosaic_0001>

<llo_original>
// kernel: tpu_custom_call.1
$region0: #{tpu_custom_call.1}
  #allocation0 [shape = 'u32[]', space=smem, size = 0x4, offset = 0x4, fixed_abs, tag = 'smem constant byte address 0x4 - core index']
  #allocation1 [shape = 'u32[144,128]{1,0:T(1,128)}', space=vmem, size = 0x12000, scoped, tag = 'internal scratch']
  %s0 = inlined_call_operand.vmem [shape: bf16[2,16,64], index: 0, kind: input, shape index: {}]
  %s1 = inlined_call_operand.hbm [shape: bf16[64,384], index: 1, kind: input, shape index: {}]
  %s2 = inlined_call_operand.vmem [shape: bf16[3,32,16], index: 2, kind: input, shape index: {}]
  %s3 = inlined_call_operand.vmem [shape: f32[1,128], index: 3, kind: input, shape index: {}]
  %s4 = inlined_call_operand.hbm [shape: f32[2,32,128], index: 4, kind: output, shape index: {}]
  %s5 = sld [smem:[#allocation0]]
  $region53: #{tpu_custom_call.1} parent=0
    _
  %s7 = ssub.s32 1, %s5
  %s8 = scalar_select 0, %s7, %s5
  $region1: #{tpu_custom_call.1} parent=0
    #allocation2 [shape = 'u8[49152]{0}', space=vmem, size = 0xc000, scoped, tag = 'input window, operand 1, single buffered']
    #allocation3 [shape = 's32[2]{0}', space=sflag, size = 0x8, scoped, tag = 'scoped memory for tpu_custom_call.1']
    #allocation4 [shape = 's32[2]{0}', space=sflag, size = 0x8, scoped, tag = 'scoped memory for tpu_custom_call.1']
    #allocation5 [shape = 'u8[32768]{0}', space=vmem, size = 0x8000, scoped, tag = 'output window, operand 0']
    %9 = vsyncpa [#allocation3], 0
    %10 = vsyncpa [#allocation4], 0
    %s11 = scalar_lea.sflag [#allocation4], 1
    %12 = vsyncpa %s11, 0
    loop: start=0, step=1, limit=4
    $region2: #{tpu_custom_call.1} parent=1 // loop_pre_header
      _
    $region3: #{tpu_custom_call.1} parent=1 // loop_header
      %s14 = sphi 0, %s18
      %p15 = scmp.ge.s32.totalorder %s14, 4
      %s24 = sphi 0, %s26
      %s27 = sphi 0, %s24
      %s28 = sphi 0, %s27
      %s44 = sphi 0, %s28
      %s48 = sphi 0, %s48
      %s50 = sphi 0, %s48
      %s51 = sphi 0, %s50
      %s65 = sphi 0, %s51
      %s69 = sphi 0, %s69
      %s71 = sphi 0, %s69
      %s72 = sphi 0, %s71
      %s86 = sphi 0, %s72
      %s90 = sphi 0, %s90
      %s92 = sphi 0, %s90
      %s93 = sphi 0, %s92
      %s107 = sphi 0, %s93
      %s113 = sphi 0, %s115
      %s116 = sphi 0, %s113
      %s117 = sphi 0, %s116
      %s133 = sphi 0, %s117
    $region4: #{tpu_custom_call.1} parent=1 // loop_header_branch
      %17 = sbr.rel (%p15) target = $region8
    $region5: #{tpu_custom_call.1} parent=1 // loop_body
      %s19 = ssub.s32 %s14, 1
      %s20 = ssub.s32 %s14, 2
      %s21 = sadd.s32 %s14, 1
      %s22 = ssub.s32 %s14, %s21
      %p23 = scmp.eq.s32.totalorder %s22, 0
      %s25 = sadd.s32 %s24, 1
      %s26 = scalar_select %p23, %s24, %s25
      %p29 = pneg %p23
      %p30 = scmp.eq.s32.totalorder %s14, 1
      %p31 = por %p29, %p30
      %p32 = scmp.ne.s32.totalorder %s24, %s27
      %p33 = scmp.eq.s32.totalorder %s14, 0
      %p34 = por %p32, %p33
      %p35 = scmp.ne.s32.totalorder %s24, %s27
      %p36 = scmp.eq.s32.totalorder %s19, 1
      %p37 = por %p35, %p36
      %p38 = scmp.ne.s32.totalorder %s27, %s28
      %p39 = scmp.eq.s32.totalorder %s19, 0
      %p40 = por %p38, %p39
      %p41 = scmp.ne.s32.totalorder %s27, %s28
      %p42 = scmp.eq.s32.totalorder %s20, 1
      %p43 = por %p41, %p42
      %p45 = scmp.ne.s32.totalorder %s28, %s44
      %p46 = scmp.eq.s32.totalorder %s20, 0
      %p47 = por %p45, %p46
      %s49 = sadd.s32 %s48, 1
      %p52 = scmp.eq.s32.totalorder %s14, 1
      %p53 = scmp.ne.s32.totalorder %s48, %s50
      %p54 = scmp.eq.s32.totalorder %s14, 0
      %p55 = por %p53, %p54
      %p56 = scmp.ne.s32.totalorder %s48, %s50
      %p57 = scmp.eq.s32.totalorder %s19, 1
      %p58 = por %p56, %p57
      %p59 = scmp.ne.s32.totalorder %s50, %s51
      %p60 = scmp.eq.s32.totalorder %s19, 0
      %p61 = por %p59, %p60
      %p62 = scmp.ne.s32.totalorder %s50, %s51
      %p63 = scmp.eq.s32.totalorder %s20, 1
      %p64 = por %p62, %p63
      %p66 = scmp.ne.s32.totalorder %s51, %s65
      %p67 = scmp.eq.s32.totalorder %s20, 0
      %p68 = por %p66, %p67
      %s70 = sadd.s32 %s69, 1
      %p73 = scmp.eq.s32.totalorder %s14, 1
      %p74 = scmp.ne.s32.totalorder %s69, %s71
      %p75 = scmp.eq.s32.totalorder %s14, 0
      %p76 = por %p74, %p75
      %p77 = scmp.ne.s32.totalorder %s69, %s71
      %p78 = scmp.eq.s32.totalorder %s19, 1
      %p79 = por %p77, %p78
      %p80 = scmp.ne.s32.totalorder %s71, %s72
      %p81 = scmp.eq.s32.totalorder %s19, 0
      %p82 = por %p80, %p81
      %p83 = scmp.ne.s32.totalorder %s71, %s72
      %p84 = scmp.eq.s32.totalorder %s20, 1
      %p85 = por %p83, %p84
      %p87 = scmp.ne.s32.totalorder %s72, %s86
      %p88 = scmp.eq.s32.totalorder %s20, 0
      %p89 = por %p87, %p88
      %s91 = sadd.s32 %s90, 1
      %p94 = scmp.eq.s32.totalorder %s14, 1
      %p95 = scmp.ne.s32.totalorder %s90, %s92
      %p96 = scmp.eq.s32.totalorder %s14, 0
      %p97 = por %p95, %p96
      %p98 = scmp.ne.s32.totalorder %s90, %s92
      %p99 = scmp.eq.s32.totalorder %s19, 1
      %p100 = por %p98, %p99
      %p101 = scmp.ne.s32.totalorder %s92, %s93
      %p102 = scmp.eq.s32.totalorder %s19, 0
      %p103 = por %p101, %p102
      %p104 = scmp.ne.s32.totalorder %s92, %s93
      %p105 = scmp.eq.s32.totalorder %s20, 1
      %p106 = por %p104, %p105
      %p108 = scmp.ne.s32.totalorder %s93, %s107
      %p109 = scmp.eq.s32.totalorder %s20, 0
      %p110 = por %p108, %p109
      %s111 = ssub.s32 %s14, %s21
      %p112 = scmp.eq.s32.totalorder %s111, 0
      %s114 = sadd.s32 %s113, 1
      %s115 = scalar_select %p112, %s113, %s114
      %p118 = pneg %p112
      %p119 = scmp.eq.s32.totalorder %s14, 1
      %p120 = por %p118, %p119
      %p121 = scmp.ne.s32.totalorder %s113, %s116
      %p122 = scmp.eq.s32.totalorder %s14, 0
      %p123 = por %p121, %p122
      %p124 = scmp.ne.s32.totalorder %s113, %s116
      %p125 = scmp.eq.s32.totalorder %s19, 1
      %p126 = por %p124, %p125
      %p127 = scmp.ne.s32.totalorder %s116, %s117
      %p128 = scmp.eq.s32.totalorder %s19, 0
      %p129 = por %p127, %p128
      %p130 = scmp.ne.s32.totalorder %s116, %s117
      %p131 = scmp.eq.s32.totalorder %s20, 1
      %p132 = por %p130, %p131
      %p134 = scmp.ne.s32.totalorder %s117, %s133
      %p135 = scmp.eq.s32.totalorder %s20, 0
      %p136 = por %p134, %p135
      %p137 = scmp.le.s32.totalorder 1, %s14
      %p138 = scmp.lt.s32.totalorder %s14, 3
      %p139 = pnand %p137, %p138
      %p140 = pneg %p139
      // Predicated region
      $region9: #{tpu_custom_call.1} parent=5 // pred_check
        _
      $region10: #{tpu_custom_call.1} parent=5 // pred_check_branch
        %142 = sbr.rel (%p139) target = $region12
      $region11: #{tpu_custom_call.1} parent=5 // pred_region
        %s143 = ssub.s32 %s14, 1
        // Predicated region
        $region13: #{tpu_custom_call.1} parent=11 // pred_check
          %p144 = pneg %p61
        $region14: #{tpu_custom_call.1} parent=11 // pred_check_branch
          %146 = sbr.rel (%p144) target = $region16
        $region15: #{tpu_custom_call.1} parent=11 // pred_region
          %s148 = ssub.s32 1536, 1536
          %149 = vsyncadd [#allocation3], %s148
          %s150 = sshll.u32 [#allocation2], 4
          %s151 = int_to_ptr.vmem [resolvable:$true] %s150
          %156 = dma.hbm_to_vmem [thread:$0]  %s1, 1536, %s151, [#allocation3], 192, 192, 12
        $region16: #{tpu_custom_call.1} parent=11 // pred_fallthru
          _
        // Predicated region
        $region17: #{tpu_custom_call.1} parent=11 // pred_check
          %p157 = pneg %p82
        $region18: #{tpu_custom_call.1} parent=11 // pred_check_branch
          %159 = sbr.rel (%p157) target = $region20
        $region19: #{tpu_custom_call.1} parent=11 // pred_region
          _
        $region20: #{tpu_custom_call.1} parent=11 // pred_fallthru
          _
        // Predicated region
        $region21: #{tpu_custom_call.1} parent=11 // pred_check
          %p160 = pneg %p103
        $region22: #{tpu_custom_call.1} parent=11 // pred_check_branch
          %162 = sbr.rel (%p160) target = $region24
        $region23: #{tpu_custom_call.1} parent=11 // pred_region
          _
        $region24: #{tpu_custom_call.1} parent=11 // pred_fallthru
          _
      $region12: #{tpu_custom_call.1} parent=5 // pred_fallthru
        _
      %p163 = scmp.lt.s32.totalorder %s14, 2
      // Predicated region
      $region25: #{tpu_custom_call.1} parent=5 // pred_check
        %p164 = pneg %p163
      $region26: #{tpu_custom_call.1} parent=5 // pred_check_branch
        %166 = sbr.rel (%p164) target = $region28
      $region27: #{tpu_custom_call.1} parent=5 // pred_region
        // Predicated region
        $region29: #{tpu_custom_call.1} parent=27 // pred_check
          %p167 = pneg %p34
        $region30: #{tpu_custom_call.1} parent=27 // pred_check_branch
          %169 = sbr.rel (%p167) target = $region32
        $region31: #{tpu_custom_call.1} parent=27 // pred_region
          %p170 = scmp.lt.s32.totalorder %s14, 1
          %s171 = scalar_select %p170, %s14, 1
          %s172 = smul.addr %s171, 2
          %s173 = smul.addr %s172, 4
          %s174 = scalar_lea.vmem %s0, %s173
        $region32: #{tpu_custom_call.1} parent=27 // pred_fallthru
          _
      $region28: #{tpu_custom_call.1} parent=5 // pred_fallthru
        _
      %p175 = scmp.le.s32.totalorder 1, %s14
      %p176 = scmp.lt.s32.totalorder %s14, 3
      %p177 = pnand %p175, %p176
      %p178 = pneg %p177
      // Predicated region
      $region33: #{tpu_custom_call.1} parent=5 // pred_check
        _
      $region34: #{tpu_custom_call.1} parent=5 // pred_check_branch
        %180 = sbr.rel (%p177) target = $region36
      $region35: #{tpu_custom_call.1} parent=5 // pred_region
        %s181 = ssub.s32 %s14, 1
        // Predicated region
        $region37: #{tpu_custom_call.1} parent=35 // pred_check
          %p182 = pneg %p61
        $region38: #{tpu_custom_call.1} parent=35 // pred_check_branch
          %184 = sbr.rel (%p182) target = $region40
        $region39: #{tpu_custom_call.1} parent=35 // pred_region
          %185 = dma.done [#allocation3], 1536
        $region40: #{tpu_custom_call.1} parent=35 // pred_fallthru
          _
        %p186 = scmp.lt.s32.totalorder %s19, 1
        %s187 = scalar_select %p186, %s19, 1
        %s188 = smul.addr %s187, 2
        %s189 = smul.addr %s188, 4
        %s190 = scalar_lea.vmem %s0, %s189
        %p191 = pneg %p40
        %p192 = pneg %p37
        %p193 = pneg %p61
        %p194 = pneg %p58
        %p195 = pneg %p82
        %p196 = pneg %p79
        %p197 = pneg %p103
        %p198 = pneg %p100
        %p199 = pneg %p129
        %p200 = pneg %p126
        %s201 = sand.u32 %s116, 1
        %s202 = scalar_lea.sflag [#allocation4], %s201
        %s203 = sand.u32 %s116, 1
        %s204 = smul.addr %s203, 32
        %s205 = scalar_lea.vmem [#allocation5], %s204
        %p206 = scmp.lt.s32.totalorder %s19, 1
        %s207 = scalar_select %p206, %s19, 1
        %s208 = smul.addr %s207, 2
        %s209 = smul.addr %s208, 4
        %s210 = scalar_lea.vmem %s0, %s209
        %v212 = vld [vmem:[%s210] sm:$0xf]
        %v213 = vld [vmem:[%s210 + $0x4] sm:$0xf]
        %v214 = vld [vmem:[#allocation2] sm:$0xff]
        %v215 = vld [vmem:[#allocation2 + $0x8] sm:$0xf]
        %v216 = vld [vmem:[#allocation2 + $0xc] sm:$0xff]
        %v217 = vld [vmem:[#allocation2 + $0x14] sm:$0xf]
        %v218 = vld [vmem:[#allocation2 + $0x18] sm:$0xff]
        %v219 = vld [vmem:[#allocation2 + $0x20] sm:$0xf]
        %v220 = vld [vmem:[#allocation2 + $0x24] sm:$0xff]
        %v221 = vld [vmem:[#allocation2 + $0x2c] sm:$0xf]
        %v222 = vld [vmem:[#allocation2 + $0x30] sm:$0xff]
        %v223 = vld [vmem:[#allocation2 + $0x38] sm:$0xf]
        %v224 = vld [vmem:[#allocation2 + $0x3c] sm:$0xff]
        %v225 = vld [vmem:[#allocation2 + $0x44] sm:$0xf]
        %v226 = vld [vmem:[#allocation2 + $0x48] sm:$0xff]
        %v227 = vld [vmem:[#allocation2 + $0x50] sm:$0xf]
        %v228 = vld [vmem:[#allocation2 + $0x54] sm:$0xff]
        %v229 = vld [vmem:[#allocation2 + $0x5c] sm:$0xf]
        %v232 = vunpack.c.l.b16 %v212
        %v233 = vunpack.c.l.b16 %v213
        %v234 = vpack.c.b16 %v233, %v232
        %v251 = vunpack.c.l.b16 %v214
        %v252 = vunpack.c.h.b16 %v214
        %v253 = vunpack.c.l.b16 %v215
        %v254 = vunpack.c.l.b16 %v216
        %v255 = vunpack.c.h.b16 %v216
        %v256 = vunpack.c.l.b16 %v217
        %v257 = vunpack.c.l.b16 %v218
        %v258 = vunpack.c.h.b16 %v218
        %v259 = vunpack.c.l.b16 %v219
        %v260 = vunpack.c.l.b16 %v220
        %v261 = vunpack.c.h.b16 %v220
        %v262 = vunpack.c.l.b16 %v221
        %v263 = vunpack.c.l.b16 %v222
        %v264 = vunpack.c.h.b16 %v222
        %v265 = vunpack.c.l.b16 %v223
        %v266 = vunpack.c.l.b16 %v224
        %v267 = vunpack.c.h.b16 %v224
        %v268 = vunpack.c.l.b16 %v225
        %v269 = vunpack.c.l.b16 %v226
        %v270 = vunpack.c.h.b16 %v226
        %v271 = vunpack.c.l.b16 %v227
        %v272 = vunpack.c.l.b16 %v228
        %v273 = vunpack.c.h.b16 %v228
        %v274 = vunpack.c.l.b16 %v229
        %v275 = vpack.c.b16 %v254, %v251
        %v276 = vpack.c.b16 %v255, %v252
        %v277 = vpack.c.b16 %v256, %v253
        %v278 = vpack.c.b16 %v260, %v257
        %v279 = vpack.c.b16 %v261, %v258
        %v280 = vpack.c.b16 %v262, %v259
        %v281 = vpack.c.b16 %v266, %v263
        %v282 = vpack.c.b16 %v267, %v264
        %v283 = vpack.c.b16 %v268, %v265
        %v284 = vpack.c.b16 %v272, %v269
        %v285 = vpack.c.b16 %v273, %v270
        %v286 = vpack.c.b16 %v274, %v271
        %vm299 = vcmask 523264
        %v301 = vsel %vm299, %v234, 0
        %303 = vmatprep.subr.bf16.mxu0 %v276
        %304 = vmatpush1.bf16.msra.mxu0 %v275
        %305 = vmatprep.subr.bf16.mxu0 %v279
        %306 = vmatpush1.bf16.msra.mxu0 %v278
        %307 = vmatprep.subr.bf16.mxu0 %v282
        %308 = vmatpush1.bf16.msra.mxu0 %v281
        %309 = vmatprep.subr.bf16.mxu0 %v285
        %310 = vmatpush1.bf16.msra.mxu0 %v284
        %311 = vmatprep.subr.bf16.mxu0 0
        %312 = vmatpush1.bf16.msra.mxu0 0
        %313 = vmatprep.subr.bf16.mxu0 0
        %314 = vmatpush1.bf16.msra.mxu0 0
        %315 = vmatprep.subr.bf16.mxu0 0
        %316 = vmatpush1.bf16.msra.mxu0 0
        %317 = vmatprep.subr.bf16.mxu0 0
        %318 = vmatpush1.bf16.msra.mxu0 0
        %319 = vmatprep.subr.bf16.mxu0 0
        %320 = vmatpush1.bf16.msra.mxu0 0
        %321 = vmatprep.subr.bf16.mxu0 0
        %322 = vmatpush1.bf16.msra.mxu0 0
        %323 = vmatprep.subr.bf16.mxu0 0
        %324 = vmatpush1.bf16.msra.mxu0 0
        %325 = vmatprep.subr.bf16.mxu0 0
        %326 = vmatpush1.bf16.msra.mxu0 0
        %327 = vmatprep.subr.bf16.mxu0 0
        %328 = vmatpush1.bf16.msra.mxu0 0
        %329 = vmatprep.subr.bf16.mxu0 0
        %330 = vmatpush1.bf16.msra.mxu0 0
        %331 = vmatprep.subr.bf16.mxu0 0
        %332 = vmatpush1.bf16.msra.mxu0 0
        %333 = vmatprep.subr.bf16.mxu0 0
        %334 = vmatpush1.bf16.msra.mxu0 0
        %335 = vmatprep.mubr.bf16.mxu0 0
        %336 = vmatmul.mubr.bf16.gmra.mrb[0].mxu0 %v301
        %v337 = vpop.f32.mrb[0].mxu0
        %v338 = vadd.f32 0.0, %v337
        %v339 = vpop.f32.mrb[0].mxu0
        %v340 = vadd.f32 0.0, %v339
        %v341 = vpop.f32.mrb[0].mxu0
        %v342 = vadd.f32 0.0, %v341
        %v343 = vpop.f32.mrb[0].mxu0
        %v344 = vadd.f32 0.0, %v343
        %345 = vdwg.mxu0
        %346 = vmatprep.subr.bf16.mxu0 0
        %347 = vmatpush1.bf16.msra.mxu0 %v277
        %348 = vmatprep.subr.bf16.mxu0 0
        %349 = vmatpush1.bf16.msra.mxu0 %v280
        %350 = vmatprep.subr.bf16.mxu0 0
        %351 = vmatpush1.bf16.msra.mxu0 %v283
        %352 = vmatprep.subr.bf16.mxu0 0
        %353 = vmatpush1.bf16.msra.mxu0 %v286
        %354 = vmatprep.subr.bf16.mxu0 0
        %355 = vmatpush1.bf16.msra.mxu0 0
        %356 = vmatprep.subr.bf16.mxu0 0
        %357 = vmatpush1.bf16.msra.mxu0 0
        %358 = vmatprep.subr.bf16.mxu0 0
        %359 = vmatpush1.bf16.msra.mxu0 0
        %360 = vmatprep.subr.bf16.mxu0 0
        %361 = vmatpush1.bf16.msra.mxu0 0
        %362 = vmatprep.subr.bf16.mxu0 0
        %363 = vmatpush1.bf16.msra.mxu0 0
        %364 = vmatprep.subr.bf16.mxu0 0
        %365 = vmatpush1.bf16.msra.mxu0 0
        %366 = vmatprep.subr.bf16.mxu0 0
        %367 = vmatpush1.bf16.msra.mxu0 0
        %368 = vmatprep.subr.bf16.mxu0 0
        %369 = vmatpush1.bf16.msra.mxu0 0
        %370 = vmatprep.subr.bf16.mxu0 0
        %371 = vmatpush1.bf16.msra.mxu0 0
        %372 = vmatprep.subr.bf16.mxu0 0
        %373 = vmatpush1.bf16.msra.mxu0 0
        %374 = vmatprep.subr.bf16.mxu0 0
        %375 = vmatpush1.bf16.msra.mxu0 0
        %376 = vmatprep.subr.bf16.mxu0 0
        %377 = vmatpush1.bf16.msra.mxu0 0
        %378 = vmatprep.mubr.bf16.mxu0 0
        %379 = vmatmul.mubr.bf16.gmra.mrb[0].mxu0 %v301
        %v380 = vpop.f32.mrb[0].mxu0
        %v381 = vadd.f32 0.0, %v380
        %v382 = vpop.f32.mrb[0].mxu0
        %v383 = vpop.f32.mrb[0].mxu0
        %v384 = vadd.f32 0.0, %v383
        %v385 = vpop.f32.mrb[0].mxu0
        %386 = vdwg.mxu0
        %v387 = vpack.c.bf16 %v342, %v338
        %v388 = vpack.c.bf16 %v344, %v340
        %v389 = vpack.c.bf16 %v384, %v381
        %v390 = vld [vmem:[%s2] sm:$0xf]
        %v391 = vld [vmem:[%s2 + $0x4] sm:$0xf]
        %v392 = vld [vmem:[%s2 + $0x8] sm:$0xf]
        %v393 = vld [vmem:[%s2 + $0xc] sm:$0xf]
        %s394 = scalar_lea.vmem %s2, 16
        %v395 = vld [vmem:[%s394] sm:$0xf]
        %v396 = vld [vmem:[%s394 + $0x4] sm:$0xf]
        %v397 = vld [vmem:[%s394 + $0x8] sm:$0xf]
        %v398 = vld [vmem:[%s394 + $0xc] sm:$0xf]
        %v403 = vunpack.c.l.b16 %v395
        %v404 = vunpack.c.l.b16 %v396
        %v405 = vunpack.c.l.b16 %v397
        %v406 = vunpack.c.l.b16 %v398
        %v407 = vpack.c.b16 %v404, %v403
        %v408 = vpack.c.b16 %v406, %v405
        %vm409 = vcmask 130048
        %v411 = vsel %vm409, %v407, 0
        %v414 = vsel %vm409, %v408, 0
        %416 = vmatprep.subr.bf16.mxu0 0
        %417 = vmatpush1.bf16.msra.mxu0 %v388
        %418 = vmatprep.subr.bf16.mxu0 0
        %419 = vmatpush1.bf16.msra.mxu0 0
        %420 = vmatprep.subr.bf16.mxu0 0
        %421 = vmatpush1.bf16.msra.mxu0 0
        %422 = vmatprep.subr.bf16.mxu0 0
        %423 = vmatpush1.bf16.msra.mxu0 0
        %424 = vmatprep.subr.bf16.mxu0 0
        %425 = vmatpush1.bf16.msra.mxu0 0
        %426 = vmatprep.subr.bf16.mxu0 0
        %427 = vmatpush1.bf16.msra.mxu0 0
        %428 = vmatprep.subr.bf16.mxu0 0
        %429 = vmatpush1.bf16.msra.mxu0 0
        %430 = vmatprep.subr.bf16.mxu0 0
        %431 = vmatpush1.bf16.msra.mxu0 0
        %432 = vmatprep.subr.bf16.mxu0 0
        %433 = vmatpush1.bf16.msra.mxu0 0
        %434 = vmatprep.subr.bf16.mxu0 0
        %435 = vmatpush1.bf16.msra.mxu0 0
        %436 = vmatprep.subr.bf16.mxu0 0
        %437 = vmatpush1.bf16.msra.mxu0 0
        %438 = vmatprep.subr.bf16.mxu0 0
        %439 = vmatpush1.bf16.msra.mxu0 0
        %440 = vmatprep.subr.bf16.mxu0 0
        %441 = vmatpush1.bf16.msra.mxu0 0
        %442 = vmatprep.subr.bf16.mxu0 0
        %443 = vmatpush1.bf16.msra.mxu0 0
        %444 = vmatprep.subr.bf16.mxu0 0
        %445 = vmatpush1.bf16.msra.mxu0 0
        %446 = vmatprep.subr.bf16.mxu0 0
        %447 = vmatpush1.bf16.msra.mxu0 0
        %448 = vmatprep.mubr.bf16.mxu0 0
        %449 = vmatmul.mubr.bf16.gmra.mrb[0].mxu0 %v411
        %v450 = vpop.f32.mrb[0].mxu0
        %v451 = vadd.f32 0.0, %v450
        %v452 = vpop.f32.mrb[0].mxu0
        %v453 = vpop.f32.mrb[0].mxu0
        %v454 = vadd.f32 0.0, %v453
        %v455 = vpop.f32.mrb[0].mxu0
        %456 = vmatprep.mubr.bf16.mxu0 0
        %457 = vmatmul.mubr.bf16.gmra.mrb[0].mxu0 %v414
        %v458 = vpop.f32.mrb[0].mxu0
        %v459 = vadd.f32 0.0, %v458
        %v460 = vpop.f32.mrb[0].mxu0
        %v461 = vpop.f32.mrb[0].mxu0
        %v462 = vadd.f32 0.0, %v461
        %v463 = vpop.f32.mrb[0].mxu0
        %464 = vdwg.mxu0
        %v469 = vunpack.c.l.b16 %v390
        %v470 = vunpack.c.l.b16 %v391
        %v471 = vunpack.c.l.b16 %v392
        %v472 = vunpack.c.l.b16 %v393
        %v473 = vpack.c.b16 %v470, %v469
        %v474 = vpack.c.b16 %v472, %v471
        %v476 = vsel %vm409, %v473, 0
        %v479 = vsel %vm409, %v474, 0
        %481 = vmatprep.subr.bf16.mxu0 0
        %482 = vmatpush1.bf16.msra.mxu0 %v387
        %483 = vmatprep.subr.bf16.mxu0 0
        %484 = vmatpush1.bf16.msra.mxu0 0
        %485 = vmatprep.subr.bf16.mxu0 0
        %486 = vmatpush1.bf16.msra.mxu0 0
        %487 = vmatprep.subr.bf16.mxu0 0
        %488 = vmatpush1.bf16.msra.mxu0 0
        %489 = vmatprep.subr.bf16.mxu0 0
        %490 = vmatpush1.bf16.msra.mxu0 0
        %491 = vmatprep.subr.bf16.mxu0 0
        %492 = vmatpush1.bf16.msra.mxu0 0
        %493 = vmatprep.subr.bf16.mxu0 0
        %494 = vmatpush1.bf16.msra.mxu0 0
        %495 = vmatprep.subr.bf16.mxu0 0
        %496 = vmatpush1.bf16.msra.mxu0 0
        %497 = vmatprep.subr.bf16.mxu0 0
        %498 = vmatpush1.bf16.msra.mxu0 0
        %499 = vmatprep.subr.bf16.mxu0 0
        %500 = vmatpush1.bf16.msra.mxu0 0
        %501 = vmatprep.subr.bf16.mxu0 0
        %502 = vmatpush1.bf16.msra.mxu0 0
        %503 = vmatprep.subr.bf16.mxu0 0
        %504 = vmatpush1.bf16.msra.mxu0 0
        %505 = vmatprep.subr.bf16.mxu0 0
        %506 = vmatpush1.bf16.msra.mxu0 0
        %507 = vmatprep.subr.bf16.mxu0 0
        %508 = vmatpush1.bf16.msra.mxu0 0
        %509 = vmatprep.subr.bf16.mxu0 0
        %510 = vmatpush1.bf16.msra.mxu0 0
        %511 = vmatprep.subr.bf16.mxu0 0
        %512 = vmatpush1.bf16.msra.mxu0 0
        %513 = vmatprep.mubr.bf16.mxu0 0
        %514 = vmatmul.mubr.bf16.gmra.mrb[0].mxu0 %v476
        %v515 = vpop.f32.mrb[0].mxu0
        %v516 = vadd.f32 %v451, %v515
        %v517 = vpop.f32.mrb[0].mxu0
        %v518 = vpop.f32.mrb[0].mxu0
        %v519 = vadd.f32 %v454, %v518
        %v520 = vpop.f32.mrb[0].mxu0
        %521 = vmatprep.mubr.bf16.mxu0 0
        %522 = vmatmul.mubr.bf16.gmra.mrb[0].mxu0 %v479
        %v523 = vpop.f32.mrb[0].mxu0
        %v524 = vadd.f32 %v459, %v523
        %v525 = vpop.f32.mrb[0].mxu0
        %v526 = vpop.f32.mrb[0].mxu0
        %v527 = vadd.f32 %v462, %v526
        %v528 = vpop.f32.mrb[0].mxu0
        %529 = vdwg.mxu0
        %s530 = scalar_lea.vmem %s2, 32
        %v531 = vld [vmem:[%s530] sm:$0xf]
        %v532 = vld [vmem:[%s530 + $0x4] sm:$0xf]
        %v533 = vld [vmem:[%s530 + $0x8] sm:$0xf]
        %v534 = vld [vmem:[%s530 + $0xc] sm:$0xf]
        %v539 = vunpack.c.l.b16 %v531
        %v540 = vunpack.c.l.b16 %v532
        %v541 = vunpack.c.l.b16 %v533
        %v542 = vunpack.c.l.b16 %v534
        %v543 = vpack.c.b16 %v540, %v539
        %v544 = vpack.c.b16 %v542, %v541
        %v546 = vsel %vm409, %v543, 0
        %v549 = vsel %vm409, %v544, 0
        %551 = vmatprep.subr.bf16.mxu0 0
        %552 = vmatpush1.bf16.msra.mxu0 %v389
        %553 = vmatprep.subr.bf16.mxu0 0
        %554 = vmatpush1.bf16.msra.mxu0 0
        %555 = vmatprep.subr.bf16.mxu0 0
        %556 = vmatpush1.bf16.msra.mxu0 0
        %557 = vmatprep.subr.bf16.mxu0 0
        %558 = vmatpush1.bf16.msra.mxu0 0
        %559 = vmatprep.subr.bf16.mxu0 0
        %560 = vmatpush1.bf16.msra.mxu0 0
        %561 = vmatprep.subr.bf16.mxu0 0
        %562 = vmatpush1.bf16.msra.mxu0 0
        %563 = vmatprep.subr.bf16.mxu0 0
        %564 = vmatpush1.bf16.msra.mxu0 0
        %565 = vmatprep.subr.bf16.mxu0 0
        %566 = vmatpush1.bf16.msra.mxu0 0
        %567 = vmatprep.subr.bf16.mxu0 0
        %568 = vmatpush1.bf16.msra.mxu0 0
        %569 = vmatprep.subr.bf16.mxu0 0
        %570 = vmatpush1.bf16.msra.mxu0 0
        %571 = vmatprep.subr.bf16.mxu0 0
        %572 = vmatpush1.bf16.msra.mxu0 0
        %573 = vmatprep.subr.bf16.mxu0 0
        %574 = vmatpush1.bf16.msra.mxu0 0
        %575 = vmatprep.subr.bf16.mxu0 0
        %576 = vmatpush1.bf16.msra.mxu0 0
        %577 = vmatprep.subr.bf16.mxu0 0
        %578 = vmatpush1.bf16.msra.mxu0 0
        %579 = vmatprep.subr.bf16.mxu0 0
        %580 = vmatpush1.bf16.msra.mxu0 0
        %581 = vmatprep.subr.bf16.mxu0 0
        %582 = vmatpush1.bf16.msra.mxu0 0
        %583 = vmatprep.mubr.bf16.mxu0 0
        %584 = vmatmul.mubr.bf16.gmra.mrb[0].mxu0 %v546
        %v585 = vpop.f32.mrb[0].mxu0
        %v586 = vadd.f32 0.0, %v585
        %v587 = vpop.f32.mrb[0].mxu0
        %v588 = vpop.f32.mrb[0].mxu0
        %v589 = vadd.f32 0.0, %v588
        %v590 = vpop.f32.mrb[0].mxu0
        %591 = vmatprep.mubr.bf16.mxu0 0
        %592 = vmatmul.mubr.bf16.gmra.mrb[0].mxu0 %v549
        %v593 = vpop.f32.mrb[0].mxu0
        %v594 = vadd.f32 0.0, %v593
        %v595 = vpop.f32.mrb[0].mxu0
        %v596 = vpop.f32.mrb[0].mxu0
        %v597 = vadd.f32 0.0, %v596
        %v598 = vpop.f32.mrb[0].mxu0
        %599 = vdwg.mxu0
        %v600 = vadd.f32 %v516, %v586
        %v601 = vadd.f32 %v519, %v589
        %v602 = vadd.f32 %v524, %v594
        %v603 = vadd.f32 %v527, %v597
        %v604 = vld [vmem:[%s3] sm:$0x1]
        %v606 = vlaneseq
        %v607 = vshrl.u32 %v606, 7
        %v608 = vsub.s32 0, %v607
        %v609 = vrot.slane %v604, %v608
        %v611 = vadd.f32 %v600, %v609
        %v612 = vadd.f32 %v601, %v609
        %v613 = vadd.f32 %v602, %v609
        %v614 = vadd.f32 %v603, %v609
        %615 = vst [vmem:[%s205] sm:$0xff] %v611
        %616 = vst [vmem:[%s205 + $0x8] sm:$0xff] %v612
        %617 = vst [vmem:[%s205 + $0x10] sm:$0xff] %v613
        %618 = vst [vmem:[%s205 + $0x18] sm:$0xff] %v614
        %s619 = sand.u32 %s116, 1
        %s620 = scalar_lea.sflag [#allocation4], %s619
        %s621 = sand.u32 %s116, 1
        %s622 = smul.addr %s621, 32
        %s623 = scalar_lea.vmem [#allocation5], %s622
        // Predicated region
        $region41: #{tpu_custom_call.1} parent=35 // pred_check
          %p624 = pneg %p126
        $region42: #{tpu_custom_call.1} parent=35 // pred_check_branch
          %626 = sbr.rel (%p624) target = $region44
        $region43: #{tpu_custom_call.1} parent=35 // pred_region
          %s628 = ssub.s32 512, 512
          %629 = vsyncadd %s620, %s628
          %s630 = smul.addr %s19, 4
          %s631 = smul.addr %s630, 128
          %s632 = scalar_lea.hbm %s4, %s631
          %s633 = sshll.u32 %s623, 4
          %s634 = int_to_ptr.vmem [resolvable:$true] %s633
          %639 = dma.vmem_to_hbm [thread:$0]  %s634, 512, %s632, %s620, 128, 128, 8
        $region44: #{tpu_custom_call.1} parent=35 // pred_fallthru
          _
      $region36: #{tpu_custom_call.1} parent=5 // pred_fallthru
        _
      %p640 = scmp.le.s32.totalorder 2, %s14
      // Predicated region
      $region45: #{tpu_custom_call.1} parent=5 // pred_check
        %p641 = pneg %p640
      $region46: #{tpu_custom_call.1} parent=5 // pred_check_branch
        %643 = sbr.rel (%p641) target = $region48
      $region47: #{tpu_custom_call.1} parent=5 // pred_region
        %s644 = ssub.s32 %s14, 2
        // Predicated region
        $region49: #{tpu_custom_call.1} parent=47 // pred_check
          %p645 = pneg %p132
        $region50: #{tpu_custom_call.1} parent=47 // pred_check_branch
          %647 = sbr.rel (%p645) target = $region52
        $region51: #{tpu_custom_call.1} parent=47 // pred_region
          %s648 = sand.u32 %s117, 1
          %s649 = scalar_lea.sflag [#allocation4], %s648
          %s650 = sand.u32 %s117, 1
          %s651 = smul.addr %s650, 32
          %s652 = scalar_lea.vmem [#allocation5], %s651
          %653 = dma.done %s649, 512
        $region52: #{tpu_custom_call.1} parent=47 // pred_fallthru
          _
      $region48: #{tpu_custom_call.1} parent=5 // pred_fallthru
        _
    $region6: #{tpu_custom_call.1} parent=1 // loop_footer
      %s18 = sadd.s32 1, %s14
    $region7: #{tpu_custom_call.1} parent=1 // loop_footer_branch
      %13 = sbr.rel target = $region3
    $region8: #{tpu_custom_call.1} parent=1 // loop_exit
      _
    %654 = vsyncpa [#allocation3], 1
    %s655 = scalar_lea.sflag [#allocation3], 1
    %656 = vsyncpa %s655, 1
    %657 = vsyncpa [#allocation4], 1
    %s658 = scalar_lea.sflag [#allocation4], 1
    %659 = vsyncpa %s658, 1

</llo_original>
